<compile_context>
chip_gen: v7x
topology: tpu7x:2x2x1
jax: 0.10.0
libtpu: 0.0.40
codegen_flags: <defaults>
</compile_context>

<pallas_src>
import functools

import jax
import jax.numpy as jnp
from jax.experimental import pallas as pl
from jax.experimental.pallas import tpu as pltpu


def _round_up(n, m):
    return ((n + m - 1) // m) * m


def _cdiv(a, b):
    return (a + b - 1) // b


# ---------------------------------------------------------------------------
# Pallas kernel: fused MLP forward (hidden layers on the MXU, output on VPU)
# ---------------------------------------------------------------------------
def _mlp_kernel(*refs, num_hidden, hidden_pads):
    # refs: x_ref, w0..w_{num_hidden-1}, w_last_ref, b_packed_ref, o_ref
    x_ref = refs[0]
    w_refs = refs[1:1 + num_hidden]
    wlast_ref = refs[1 + num_hidden]
    b_ref = refs[2 + num_hidden]
    o_ref = refs[-1]

    h = x_ref[...]  # bf16 activations feed the MXU directly

    # Hidden layers: bf16 x bf16 -> f32 matmul (MXU) + f32 bias + ReLU (VPU).
    for i in range(num_hidden):
        w = w_refs[i][...]                       # (K_pad, N_pad) bf16, pre-transposed/padded
        acc = jnp.dot(h.astype(jnp.bfloat16), w,
                      preferred_element_type=jnp.float32)
        b = b_ref[i, :hidden_pads[i]]            # (N_pad,) f32 zero-padded bias row
        # Dropout (eval mode) is identity; bias + ReLU stay in f32.
        h = jnp.maximum(acc + b, 0.0)

    # Output layer (out_features == 1): f32 VPU multiply + lane reduction
    # instead of pushing a 1-column matmul through the MXU.
    w_last = wlast_ref[...].astype(jnp.float32)  # (1, K_pad), zero-padded
    b_last = b_ref[num_hidden, :1]               # (1,)
    out = jnp.sum(h * w_last, axis=-1, keepdims=True) + b_last
    # TODO(synk): the (tb, 1) store is lane-sparse (masked vst); a lane-dense
    # (1, tb) writeback needs a column->row relayout in-kernel — skipped since
    # output bytes are tiny relative to input (single-digit % at best).
    o_ref[...] = out.astype(o_ref.dtype)


# ---------------------------------------------------------------------------
# One-time parameter packing (hoisted out of the per-forward path)
# ---------------------------------------------------------------------------
def pack_dqn_value_params(layer_params):
    """Pack PyTorch-convention (W(out,in), b(out,)) params into kernel layout.

    - Hidden weights transposed to (in, out), zero-padded so the output dim
      (and the matching next-layer K dim) is a multiple of 128, cast to bf16.
    - Final 1-wide layer stored as a (1, K_pad) bf16 row for a VPU reduce.
    - All biases packed into a single (num_layers, max_pad) f32 array.
    - First-layer K (= input_size) is deliberately left unpadded.
    Zero padding is exact: padded activations are 0 and padded weights are 0,
    so results match the unpadded network.
    """
    num_layers = len(layer_params)
    num_hidden = num_layers - 1
    in0 = layer_params[0][0].shape[1]
    hidden_pads = [_round_up(layer_params[i][0].shape[0], 128) for i in range(num_hidden)]

    weights = []
    prev_pad = in0                                # first-layer K dim stays unpadded (matches x)
    for i in range(num_hidden):
        w, _ = layer_params[i]
        wt = jnp.asarray(w, jnp.float32).T        # (in, out)
        wt = jnp.pad(wt, ((0, prev_pad - wt.shape[0]),
                          (0, hidden_pads[i] - wt.shape[1])))
        weights.append(wt.astype(jnp.bfloat16))
        prev_pad = hidden_pads[i]

    w_last_raw, b_last_raw = layer_params[-1]     # (1, h_last), (1,)
    w_last = jnp.asarray(w_last_raw, jnp.float32).reshape(1, -1)
    w_last = jnp.pad(w_last, ((0, 0), (0, prev_pad - w_last.shape[1])))
    w_last = w_last.astype(jnp.bfloat16)

    max_pad = max(hidden_pads)
    b_packed = jnp.zeros((num_layers, max_pad), jnp.float32)
    for i in range(num_hidden):
        b = jnp.asarray(layer_params[i][1], jnp.float32)
        b_packed = b_packed.at[i, :b.shape[0]].set(b)
    b_packed = b_packed.at[num_layers - 1, 0].set(
        jnp.asarray(b_last_raw, jnp.float32).reshape(())
    )

    return {
        "weights": weights,              # list of (K_pad, N_pad) bf16
        "w_last": w_last,                # (1, K_pad) bf16
        "b_packed": b_packed,            # (num_layers, max_pad) f32
        "hidden_pads": tuple(hidden_pads),
        "input_size": in0,
    }


# ---------------------------------------------------------------------------
# Forward wrapper: single pallas_call, batch tiled along a "parallel" grid axis
# ---------------------------------------------------------------------------
_SINGLE_BLOCK_MAX = 1024   # whole batch as one block only up to here
_MAX_TILE = 8192           # per-step VMEM (~9 MiB worst case) fits every gen's
                           # scoped default (16/32/32 MiB) — no vmem_limit_bytes
                           # override needed while the cap holds.


def dqn_value_forward(x, packed, *, batch_tile=2048):
    weights = packed["weights"]
    w_last = packed["w_last"]
    b_packed = packed["b_packed"]
    hidden_pads = packed["hidden_pads"]
    num_hidden = len(weights)

    # bf16 activations: halves HBM bytes for x (the dominant byte stream) and
    # feeds the MXU's native bf16 path; f32 accumulation inside the kernel.
    x = jnp.asarray(x, jnp.bfloat16)
    batch, in_size = x.shape
    assert in_size == packed["input_size"]

    if batch <= min(batch_tile, _SINGLE_BLOCK_MAX):
        tb, pb, n_tiles = batch, batch, 1
    else:
        tile = min(batch_tile, _MAX_TILE)
        n_tiles = max(_cdiv(batch, tile), 2)
        if n_tiles % 2:
            # Even grid so v7x's two TensorCores both get work via the
            # "parallel" axis; harmless on single-TC v5e/v6e.
            n_tiles += 1
        tb = _round_up(_cdiv(batch, n_tiles), 8)   # sublane-aligned row tiles
        pb = n_tiles * tb
        if pb != batch:
            x = jnp.pad(x, ((0, pb - batch), (0, 0)))
    grid = (n_tiles,)

    kernel_inputs = [x, *weights, w_last, b_packed]

    # VMEM guardrail on *resident* bytes: double-buffered x/out tiles +
    # single-buffered weights/biases + f32 activations. (Not the whole x.)
    weight_bytes = sum(a.size * a.dtype.itemsize for a in kernel_inputs[1:])
    x_tile_bytes = tb * in_size * x.dtype.itemsize
    out_tile_bytes = tb * 1 * 4
    act_bytes = tb * max(hidden_pads) * 4
    resident = 2 * x_tile_bytes + 2 * out_tile_bytes + weight_bytes + 2 * act_bytes
    assert resident < 14 * 1024 * 1024, \
        "TODO(synk): add weight/K tiling or lower batch_tile"

    def replicated(arr):
        nd = arr.ndim
        idx = lambda i, _nd=nd: (0,) * _nd
        # Constant index map -> double buffering buys nothing; single-buffer.
        try:
            return pl.BlockSpec(arr.shape, idx, pipeline_mode=pl.Buffered(1))
        except TypeError:  # older BlockSpec without pipeline_mode
            return pl.BlockSpec(arr.shape, idx)

    in_specs = [pl.BlockSpec((tb, in_size), lambda i: (i, 0))]
    in_specs += [replicated(a) for a in kernel_inputs[1:]]
    out_specs = pl.BlockSpec((tb, 1), lambda i: (i, 0))
    out_shape = jax.ShapeDtypeStruct((pb, 1), jnp.float32)

    kernel = functools.partial(_mlp_kernel, num_hidden=num_hidden,
                               hidden_pads=hidden_pads)

    out = pl.pallas_call(
        kernel,
        out_shape=out_shape,
        grid=grid,
        in_specs=in_specs,
        out_specs=out_specs,
        compiler_params=pltpu.CompilerParams(
            dimension_semantics=("parallel",)),
    )(*kernel_inputs)

    if pb != batch:
        out = out[:batch]
    return out


# ---------------------------------------------------------------------------
# Deterministic NoisyLinear parameter construction (glue, plain JAX)
# ---------------------------------------------------------------------------
def _noise_f(x):
    return jnp.sign(x) * jnp.sqrt(jnp.abs(x))


def make_noisy_linear_params(key, in_features, out_features, sigma0=0.5):
    k_wmu, k_bmu, k_ein, k_eout = jax.random.split(key, 4)
    bound = 1.0 / jnp.sqrt(float(in_features))

    w_mu = jax.random.uniform(k_wmu, (out_features, in_features),
                              minval=-bound, maxval=bound, dtype=jnp.float32)
    b_mu = jax.random.uniform(k_bmu, (out_features,),
                              minval=-bound, maxval=bound, dtype=jnp.float32)
    w_sigma = jnp.full((out_features, in_features),
                       sigma0 / jnp.sqrt(float(in_features)), jnp.float32)
    b_sigma = jnp.full((out_features,),
                       sigma0 / jnp.sqrt(float(in_features)), jnp.float32)

    # Factorized Gaussian noise (deterministic via fixed key).
    eps_in = _noise_f(jax.random.normal(k_ein, (in_features,), jnp.float32))
    eps_out = _noise_f(jax.random.normal(k_eout, (out_features,), jnp.float32))

    w_eff = w_mu + w_sigma * jnp.outer(eps_out, eps_in)
    b_eff = b_mu + b_sigma * eps_out
    return w_eff, b_eff


def build_dqn_value_params(key, input_size, hidden_sizes):
    sizes = [input_size] + list(hidden_sizes) + [1]
    params = []
    for i in range(len(sizes) - 1):
        key, sub = jax.random.split(key)
        params.append(make_noisy_linear_params(sub, sizes[i], sizes[i + 1]))
    return params


# Pure-JAX references for sanity checks.
def _reference_forward(x, layer_params, *, bf16_matmul=False):
    h = jnp.asarray(x, jnp.float32)
    n = len(layer_params)
    for i, (w, b) in enumerate(layer_params):
        wt = jnp.asarray(w, jnp.float32).T
        b = jnp.asarray(b, jnp.float32)
        if i < n - 1:
            if bf16_matmul:
                h = jnp.dot(h.astype(jnp.bfloat16), wt.astype(jnp.bfloat16),
                            preferred_element_type=jnp.float32)
            else:
                h = jnp.dot(h, wt)
            h = jnp.maximum(h + b, 0.0)
        else:
            if bf16_matmul:
                wt = wt.astype(jnp.bfloat16).astype(jnp.float32)
            h = h @ wt + b
    return h


if __name__ == "__main__":
    # DQNValueInfo(input_size=32, hidden_sizes=[64, 32], dropout=0.1)
    input_size = 32
    hidden_sizes = [64, 32]

    key = jax.random.PRNGKey(0)
    key_x, key_x2, key_p = jax.random.split(key, 3)

    raw_params = build_dqn_value_params(key_p, input_size, hidden_sizes)
    packed = pack_dqn_value_params(raw_params)      # one-time layout work

    # --- small batch: single-block path -----------------------------------
    x = jax.random.normal(key_x, (8, input_size), dtype=jnp.float32)
    out = jax.block_until_ready(dqn_value_forward(x, packed))
    assert out.shape == (8, 1), out.shape
    ref_match = _reference_forward(x, raw_params, bf16_matmul=True)
    ref_f32 = _reference_forward(x, raw_params)
    assert jnp.allclose(out, ref_match, atol=2e-3, rtol=2e-3), "mismatch vs bf16 reference"
    assert jnp.allclose(out, ref_f32, atol=5e-2, rtol=5e-2), "mismatch vs f32 reference"

    # --- larger batch, tiny tile: exercises tiling / even grid / padding ---
    x2 = jax.random.normal(key_x2, (200, input_size), dtype=jnp.float32)
    out2 = jax.block_until_ready(dqn_value_forward(x2, packed, batch_tile=64))
    assert out2.shape == (200, 1), out2.shape
    ref2 = _reference_forward(x2, raw_params, bf16_matmul=True)
    assert jnp.allclose(out2, ref2, atol=2e-3, rtol=2e-3), "mismatch (tiled path)"

    print("KERNEL_OK")
</pallas_src>

<mosaic_0001>
module attributes {stable_mosaic.version = 11 : i64} {
  func.func @_mlp_kernel(%arg0: i32, %arg1: memref<8x32xbf16, #tpu.memory_space<vmem>>, %arg2: memref<32x128xbf16, #tpu.memory_space<vmem>>, %arg3: memref<128x128xbf16, #tpu.memory_space<vmem>>, %arg4: memref<1x128xbf16, #tpu.memory_space<vmem>>, %arg5: memref<3x128xf32, #tpu.memory_space<vmem>>, %arg6: memref<8x1xf32, #tpu.memory_space<vmem>>) attributes {dimension_semantics = [#tpu.dimension_semantics<parallel>], iteration_bounds = array<i64: 1>, scalar_prefetch = 0 : i64, scratch_operands = 0 : i64, tpu.core_type = #tpu.core_type<tc>, window_params = [{transform_indices = @transform_0, window_bounds = array<i64: 8, 32>}, {pipeline_mode = #tpu.pipeline_mode<synchronous>, transform_indices = @transform_1, window_bounds = array<i64: 32, 128>}, {pipeline_mode = #tpu.pipeline_mode<synchronous>, transform_indices = @transform_2, window_bounds = array<i64: 128, 128>}, {pipeline_mode = #tpu.pipeline_mode<synchronous>, transform_indices = @transform_3, window_bounds = array<i64: 1, 128>}, {pipeline_mode = #tpu.pipeline_mode<synchronous>, transform_indices = @transform_4, window_bounds = array<i64: 3, 128>}, {transform_indices = @transform_5, window_bounds = array<i64: 8, 1>}]} {
    %c0 = arith.constant 0 : index
    %c0_0 = arith.constant 0 : index
    %0 = vector.load %arg1[%c0, %c0_0] : memref<8x32xbf16, #tpu.memory_space<vmem>>, vector<8x32xbf16>
    %c0_1 = arith.constant 0 : index
    %c0_2 = arith.constant 0 : index
    %1 = vector.load %arg2[%c0_1, %c0_2] : memref<32x128xbf16, #tpu.memory_space<vmem>>, vector<32x128xbf16>
    %cst = arith.constant dense<0.000000e+00> : vector<8x128xf32>
    %2 = tpu.matmul %0, %1, %cst {dimension_numbers = #tpu.dot_dimension_numbers<[1], [0], [0], [1], [0, 0, 1, 1], [], []>} : vector<8x32xbf16>, vector<32x128xbf16>, vector<8x128xf32> -> vector<8x128xf32>
    %c0_3 = arith.constant 0 : index
    %c0_4 = arith.constant 0 : index
    %3 = vector.load %arg5[%c0_3, %c0_4] : memref<3x128xf32, #tpu.memory_space<vmem>>, vector<1x128xf32>
    %4 = vector.shape_cast %3 : vector<1x128xf32> to vector<128xf32>
    %5 = vector.shape_cast %4 : vector<128xf32> to vector<1x128xf32>
    %6 = vector.broadcast %5 : vector<1x128xf32> to vector<8x128xf32>
    %7 = arith.addf %2, %6 : vector<8x128xf32>
    %cst_5 = arith.constant 0.000000e+00 : f32
    %8 = vector.broadcast %cst_5 : f32 to vector<8x128xf32>
    %9 = arith.maximumf %7, %8 : vector<8x128xf32>
    %c0_6 = arith.constant 0 : index
    %c0_7 = arith.constant 0 : index
    %10 = vector.load %arg3[%c0_6, %c0_7] : memref<128x128xbf16, #tpu.memory_space<vmem>>, vector<128x128xbf16>
    %11 = arith.truncf %9 : vector<8x128xf32> to vector<8x128xbf16>
    %cst_8 = arith.constant dense<0.000000e+00> : vector<8x128xf32>
    %12 = tpu.matmul %11, %10, %cst_8 {dimension_numbers = #tpu.dot_dimension_numbers<[1], [0], [0], [1], [0, 0, 1, 1], [], []>} : vector<8x128xbf16>, vector<128x128xbf16>, vector<8x128xf32> -> vector<8x128xf32>
    %c1 = arith.constant 1 : index
    %c0_9 = arith.constant 0 : index
    %13 = vector.load %arg5[%c1, %c0_9] : memref<3x128xf32, #tpu.memory_space<vmem>>, vector<1x128xf32>
    %14 = vector.shape_cast %13 : vector<1x128xf32> to vector<128xf32>
    %15 = vector.shape_cast %14 : vector<128xf32> to vector<1x128xf32>
    %16 = vector.broadcast %15 : vector<1x128xf32> to vector<8x128xf32>
    %17 = arith.addf %12, %16 : vector<8x128xf32>
    %cst_10 = arith.constant 0.000000e+00 : f32
    %18 = vector.broadcast %cst_10 : f32 to vector<8x128xf32>
    %19 = arith.maximumf %17, %18 : vector<8x128xf32>
    %c0_11 = arith.constant 0 : index
    %c0_12 = arith.constant 0 : index
    %20 = vector.load %arg4[%c0_11, %c0_12] : memref<1x128xbf16, #tpu.memory_space<vmem>>, vector<1x128xbf16>
    %21 = arith.extf %20 : vector<1x128xbf16> to vector<1x128xf32>
    %c2 = arith.constant 2 : index
    %c0_13 = arith.constant 0 : index
    %22 = vector.load %arg5[%c2, %c0_13] : memref<3x128xf32, #tpu.memory_space<vmem>>, vector<1x1xf32>
    %23 = vector.shape_cast %22 : vector<1x1xf32> to vector<1xf32>
    %24 = vector.broadcast %21 : vector<1x128xf32> to vector<8x128xf32>
    %25 = arith.mulf %19, %24 : vector<8x128xf32>
    %cst_14 = arith.constant dense<0.000000e+00> : vector<8xf32>
    %26 = vector.multi_reduction <add>, %25, %cst_14 [1] : vector<8x128xf32> to vector<8xf32>
    %27 = vector.shape_cast %26 : vector<8xf32> to vector<8x1xf32>
    %28 = vector.shape_cast %23 : vector<1xf32> to vector<1x1xf32>
    %29 = vector.broadcast %28 : vector<1x1xf32> to vector<8x1xf32>
    %30 = arith.addf %27, %29 : vector<8x1xf32>
    %c0_15 = arith.constant 0 : index
    %c0_16 = arith.constant 0 : index
    %31 = vector.load %arg6[%c0_15, %c0_16] : memref<8x1xf32, #tpu.memory_space<vmem>>, vector<8x1xf32>
    tpu.vector_store %arg6[%c0_15, %c0_16], %30 {strides = array<i32>} : memref<8x1xf32, #tpu.memory_space<vmem>>, vector<8x1xf32>,
    return
  }
  func.func @transform_0(%arg0: i32) -> (i32, i32) {
    %c0_i32 = arith.constant 0 : i32
    %c0_i32_0 = arith.constant 0 : i32
    return %arg0, %c0_i32 : i32, i32
  }
  func.func @transform_1(%arg0: i32) -> (i32, i32) {
    %c0_i32 = arith.constant 0 : i32
    %c0_i32_0 = arith.constant 0 : i32
    %c0_i32_1 = arith.constant 0 : i32
    return %c0_i32, %c0_i32_0 : i32, i32
  }
  func.func @transform_2(%arg0: i32) -> (i32, i32) {
    %c0_i32 = arith.constant 0 : i32
    %c0_i32_0 = arith.constant 0 : i32
    %c0_i32_1 = arith.constant 0 : i32
    return %c0_i32, %c0_i32_0 : i32, i32
  }
  func.func @transform_3(%arg0: i32) -> (i32, i32) {
    %c0_i32 = arith.constant 0 : i32
    %c0_i32_0 = arith.constant 0 : i32
    %c0_i32_1 = arith.constant 0 : i32
    return %c0_i32, %c0_i32_0 : i32, i32
  }
  func.func @transform_4(%arg0: i32) -> (i32, i32) {
    %c0_i32 = arith.constant 0 : i32
    %c0_i32_0 = arith.constant 0 : i32
    %c0_i32_1 = arith.constant 0 : i32
    return %c0_i32, %c0_i32_0 : i32, i32
  }
  func.func @transform_5(%arg0: i32) -> (i32, i32) {
    %c0_i32 = arith.constant 0 : i32
    %c0_i32_0 = arith.constant 0 : i32
    return %arg0, %c0_i32 : i32, i32
  }
}

</mosaic_0001>

<llo_original>
// kernel: tpu_custom_call.1
$region0: #{tpu_custom_call.1}
  #allocation0 [shape = 'u32[]', space=smem, size = 0x4, offset = 0x4, fixed_abs, tag = 'smem constant byte address 0x4 - core index']
  #allocation1 [shape = 'u32[144,128]{1,0:T(1,128)}', space=vmem, size = 0x12000, scoped, tag = 'internal scratch']
  %s0 = inlined_call_operand.hbm [shape: bf16[8,32], index: 0, kind: input, shape index: {}]
  %s1 = inlined_call_operand.hbm [shape: bf16[32,128], index: 1, kind: input, shape index: {}]
  %s2 = inlined_call_operand.hbm [shape: bf16[128,128], index: 2, kind: input, shape index: {}]
  %s3 = inlined_call_operand.vmem [shape: bf16[1,128], index: 3, kind: input, shape index: {}]
  %s4 = inlined_call_operand.vmem [shape: f32[3,128], index: 4, kind: input, shape index: {}]
  %s5 = inlined_call_operand.vmem [shape: f32[8,1], index: 5, kind: output, shape index: {}]
  %s6 = sld [smem:[#allocation0]]
  $region42: #{tpu_custom_call.1} parent=0
    _
  %s8 = ssub.s32 1, %s6
  %s9 = scalar_select 0, %s8, %s6
  $region1: #{tpu_custom_call.1} parent=0
    #allocation2 [shape = 'u8[2048]{0}', space=vmem, size = 0x800, scoped, tag = 'input window, operand 0, single buffered']
    #allocation3 [shape = 's32[1]{0}', space=sflag, size = 0x4, scoped, tag = 'scoped memory for tpu_custom_call.1']
    #allocation4 [shape = 'u8[8192]{0}', space=vmem, size = 0x2000, scoped, tag = 'input window, operand 1, single buffered']
    #allocation5 [shape = 's32[1]{0}', space=sflag, size = 0x4, scoped, tag = 'scoped memory for tpu_custom_call.1']
    #allocation6 [shape = 'u8[32768]{0}', space=vmem, size = 0x8000, scoped, tag = 'input window, operand 2, single buffered']
    %10 = vsyncpa [#allocation3], 0
    %11 = vsyncpa [#allocation5], 0
    // Predicated region
    $region2: #{tpu_custom_call.1} parent=1 // pred_check
      _
    $region3: #{tpu_custom_call.1} parent=1 // pred_check_branch
      %13 = sbr.rel (0) target = $region5
    $region4: #{tpu_custom_call.1} parent=1 // pred_region
      %s15 = ssub.s32 64, 64
      %16 = vsyncadd [#allocation3], %s15
      %s18 = sshll.u32 [#allocation2], 4
      %s19 = int_to_ptr.vmem [resolvable:$true] %s18
      %21 = dma.hbm_to_vmem [thread:$0]  %s0, 64, %s19, [#allocation3]
    $region5: #{tpu_custom_call.1} parent=1 // pred_fallthru
      _
    // Predicated region
    $region6: #{tpu_custom_call.1} parent=1 // pred_check
      _
    $region7: #{tpu_custom_call.1} parent=1 // pred_check_branch
      %23 = sbr.rel (0) target = $region9
    $region8: #{tpu_custom_call.1} parent=1 // pred_region
      %s25 = ssub.s32 256, 256
      %26 = vsyncadd [#allocation5], %s25
      %s27 = sshll.u32 [#allocation4], 4
      %s28 = int_to_ptr.vmem [resolvable:$true] %s27
      %33 = dma.hbm_to_vmem [thread:$0]  %s1, 256, %s28, [#allocation5], 64, 64, 4
    $region9: #{tpu_custom_call.1} parent=1 // pred_fallthru
      _
    // Predicated region
    $region10: #{tpu_custom_call.1} parent=1 // pred_check
      _
    $region11: #{tpu_custom_call.1} parent=1 // pred_check_branch
      %35 = sbr.rel (0) target = $region13
    $region12: #{tpu_custom_call.1} parent=1 // pred_region
      %s37 = ssub.s32 1024, 1024
      %38 = vsyncadd [#allocation5], %s37
      %s39 = sshll.u32 [#allocation6], 4
      %s40 = int_to_ptr.vmem [resolvable:$true] %s39
      %45 = dma.hbm_to_vmem [thread:$0]  %s2, 1024, %s40, [#allocation5], 64, 64, 4
    $region13: #{tpu_custom_call.1} parent=1 // pred_fallthru
      _
    // Predicated region
    $region14: #{tpu_custom_call.1} parent=1 // pred_check
      _
    $region15: #{tpu_custom_call.1} parent=1 // pred_check_branch
      %47 = sbr.rel (0) target = $region17
    $region16: #{tpu_custom_call.1} parent=1 // pred_region
      _
    $region17: #{tpu_custom_call.1} parent=1 // pred_fallthru
      _
    // Predicated region
    $region18: #{tpu_custom_call.1} parent=1 // pred_check
      _
    $region19: #{tpu_custom_call.1} parent=1 // pred_check_branch
      %49 = sbr.rel (0) target = $region21
    $region20: #{tpu_custom_call.1} parent=1 // pred_region
      _
    $region21: #{tpu_custom_call.1} parent=1 // pred_fallthru
      _
    // Predicated region
    $region22: #{tpu_custom_call.1} parent=1 // pred_check
      _
    $region23: #{tpu_custom_call.1} parent=1 // pred_check_branch
      %51 = sbr.rel (0) target = $region25
    $region24: #{tpu_custom_call.1} parent=1 // pred_region
      %52 = dma.done [#allocation3], 64
    $region25: #{tpu_custom_call.1} parent=1 // pred_fallthru
      _
    // Predicated region
    $region26: #{tpu_custom_call.1} parent=1 // pred_check
      _
    $region27: #{tpu_custom_call.1} parent=1 // pred_check_branch
      %54 = sbr.rel (0) target = $region29
    $region28: #{tpu_custom_call.1} parent=1 // pred_region
      %55 = dma.done [#allocation5], 256
    $region29: #{tpu_custom_call.1} parent=1 // pred_fallthru
      _
    // Predicated region
    $region30: #{tpu_custom_call.1} parent=1 // pred_check
      _
    $region31: #{tpu_custom_call.1} parent=1 // pred_check_branch
      %57 = sbr.rel (0) target = $region33
    $region32: #{tpu_custom_call.1} parent=1 // pred_region
      %58 = dma.done [#allocation5], 1024
    $region33: #{tpu_custom_call.1} parent=1 // pred_fallthru
      _
    %v60 = vld [vmem:[#allocation2] sm:$0xf]
    %v61 = vld [vmem:[#allocation4] sm:$0xf]
    %v62 = vld [vmem:[#allocation4 + $0x4] sm:$0xf]
    %v63 = vld [vmem:[#allocation4 + $0x8] sm:$0xf]
    %v64 = vld [vmem:[#allocation4 + $0xc] sm:$0xf]
    %v65 = vld [vmem:[%s4] sm:$0x1]
    %v66 = vlaneseq
    %v67 = vshrl.u32 %v66, 7
    %v68 = vsub.s32 0, %v67
    %v69 = vrot.slane %v65, %v68
    %v74 = vunpack.c.l.b16 %v61
    %v75 = vunpack.c.l.b16 %v62
    %v76 = vunpack.c.l.b16 %v63
    %v77 = vunpack.c.l.b16 %v64
    %v78 = vpack.c.b16 %v75, %v74
    %v79 = vpack.c.b16 %v77, %v76
    %vm82 = vcmask 261120
    %v84 = vsel %vm82, %v60, 0
    %86 = vmatprep.subr.bf16.mxu0 0
    %87 = vmatpush1.bf16.msra.mxu0 %v78
    %88 = vmatprep.subr.bf16.mxu0 0
    %89 = vmatpush1.bf16.msra.mxu0 %v79
    %90 = vmatprep.subr.bf16.mxu0 0
    %91 = vmatpush1.bf16.msra.mxu0 0
    %92 = vmatprep.subr.bf16.mxu0 0
    %93 = vmatpush1.bf16.msra.mxu0 0
    %94 = vmatprep.subr.bf16.mxu0 0
    %95 = vmatpush1.bf16.msra.mxu0 0
    %96 = vmatprep.subr.bf16.mxu0 0
    %97 = vmatpush1.bf16.msra.mxu0 0
    %98 = vmatprep.subr.bf16.mxu0 0
    %99 = vmatpush1.bf16.msra.mxu0 0
    %100 = vmatprep.subr.bf16.mxu0 0
    %101 = vmatpush1.bf16.msra.mxu0 0
    %102 = vmatprep.subr.bf16.mxu0 0
    %103 = vmatpush1.bf16.msra.mxu0 0
    %104 = vmatprep.subr.bf16.mxu0 0
    %105 = vmatpush1.bf16.msra.mxu0 0
    %106 = vmatprep.subr.bf16.mxu0 0
    %107 = vmatpush1.bf16.msra.mxu0 0
    %108 = vmatprep.subr.bf16.mxu0 0
    %109 = vmatpush1.bf16.msra.mxu0 0
    %110 = vmatprep.subr.bf16.mxu0 0
    %111 = vmatpush1.bf16.msra.mxu0 0
    %112 = vmatprep.subr.bf16.mxu0 0
    %113 = vmatpush1.bf16.msra.mxu0 0
    %114 = vmatprep.subr.bf16.mxu0 0
    %115 = vmatpush1.bf16.msra.mxu0 0
    %116 = vmatprep.subr.bf16.mxu0 0
    %117 = vmatpush1.bf16.msra.mxu0 0
    %118 = vmatprep.mubr.bf16.mxu0 0
    %119 = vmatmul.mubr.bf16.gmra.mrb[0].mxu0 %v84
    %v120 = vpop.f32.mrb[0].mxu0
    %v121 = vadd.f32 %v69, %v120
    %v122 = vpop.f32.mrb[0].mxu0
    %v123 = vpop.f32.mrb[0].mxu0
    %v124 = vpop.f32.mrb[0].mxu0
    %125 = vdwg.mxu0
    %v126 = vmax.f32 %v121, 0.0
    %v127 = vld [vmem:[#allocation6] sm:$0xf]
    %v128 = vld [vmem:[#allocation6 + $0x4] sm:$0xf]
    %v129 = vld [vmem:[#allocation6 + $0x8] sm:$0xf]
    %v130 = vld [vmem:[#allocation6 + $0xc] sm:$0xf]
    %v131 = vld [vmem:[#allocation6 + $0x10] sm:$0xf]
    %v132 = vld [vmem:[#allocation6 + $0x14] sm:$0xf]
    %v133 = vld [vmem:[#allocation6 + $0x18] sm:$0xf]
    %v134 = vld [vmem:[#allocation6 + $0x1c] sm:$0xf]
    %v135 = vld [vmem:[#allocation6 + $0x20] sm:$0xf]
    %v136 = vld [vmem:[#allocation6 + $0x24] sm:$0xf]
    %v137 = vld [vmem:[#allocation6 + $0x28] sm:$0xf]
    %v138 = vld [vmem:[#allocation6 + $0x2c] sm:$0xf]
    %v139 = vld [vmem:[#allocation6 + $0x30] sm:$0xf]
    %v140 = vld [vmem:[#allocation6 + $0x34] sm:$0xf]
    %v141 = vld [vmem:[#allocation6 + $0x38] sm:$0xf]
    %v142 = vld [vmem:[#allocation6 + $0x3c] sm:$0xf]
    %v143 = vpack.c.bf16 %v126, %v126
    %v144 = vld [vmem:[%s4 + $0x1] sm:$0x1]
    %v145 = vlaneseq
    %v146 = vshrl.u32 %v145, 7
    %v147 = vsub.s32 0, %v146
    %v148 = vrot.slane %v144, %v147
    %v165 = vunpack.c.l.b16 %v127
    %v166 = vunpack.c.l.b16 %v128
    %v167 = vunpack.c.l.b16 %v129
    %v168 = vunpack.c.l.b16 %v130
    %v169 = vunpack.c.l.b16 %v131
    %v170 = vunpack.c.l.b16 %v132
    %v171 = vunpack.c.l.b16 %v133
    %v172 = vunpack.c.l.b16 %v134
    %v173 = vunpack.c.l.b16 %v135
    %v174 = vunpack.c.l.b16 %v136
    %v175 = vunpack.c.l.b16 %v137
    %v176 = vunpack.c.l.b16 %v138
    %v177 = vunpack.c.l.b16 %v139
    %v178 = vunpack.c.l.b16 %v140
    %v179 = vunpack.c.l.b16 %v141
    %v180 = vunpack.c.l.b16 %v142
    %v181 = vpack.c.b16 %v166, %v165
    %v182 = vpack.c.b16 %v168, %v167
    %v183 = vpack.c.b16 %v170, %v169
    %v184 = vpack.c.b16 %v172, %v171
    %v185 = vpack.c.b16 %v174, %v173
    %v186 = vpack.c.b16 %v176, %v175
    %v187 = vpack.c.b16 %v178, %v177
    %v188 = vpack.c.b16 %v180, %v179
    %197 = vmatprep.subr.bf16.mxu0 0
    %198 = vmatpush1.bf16.msra.mxu0 %v181
    %199 = vmatprep.subr.bf16.mxu0 0
    %200 = vmatpush1.bf16.msra.mxu0 %v182
    %201 = vmatprep.subr.bf16.mxu0 0
    %202 = vmatpush1.bf16.msra.mxu0 %v183
    %203 = vmatprep.subr.bf16.mxu0 0
    %204 = vmatpush1.bf16.msra.mxu0 %v184
    %205 = vmatprep.subr.bf16.mxu0 0
    %206 = vmatpush1.bf16.msra.mxu0 %v185
    %207 = vmatprep.subr.bf16.mxu0 0
    %208 = vmatpush1.bf16.msra.mxu0 %v186
    %209 = vmatprep.subr.bf16.mxu0 0
    %210 = vmatpush1.bf16.msra.mxu0 %v187
    %211 = vmatprep.subr.bf16.mxu0 0
    %212 = vmatpush1.bf16.msra.mxu0 %v188
    %213 = vmatprep.subr.bf16.mxu0 0
    %214 = vmatpush1.bf16.msra.mxu0 0
    %215 = vmatprep.subr.bf16.mxu0 0
    %216 = vmatpush1.bf16.msra.mxu0 0
    %217 = vmatprep.subr.bf16.mxu0 0
    %218 = vmatpush1.bf16.msra.mxu0 0
    %219 = vmatprep.subr.bf16.mxu0 0
    %220 = vmatpush1.bf16.msra.mxu0 0
    %221 = vmatprep.subr.bf16.mxu0 0
    %222 = vmatpush1.bf16.msra.mxu0 0
    %223 = vmatprep.subr.bf16.mxu0 0
    %224 = vmatpush1.bf16.msra.mxu0 0
    %225 = vmatprep.subr.bf16.mxu0 0
    %226 = vmatpush1.bf16.msra.mxu0 0
    %227 = vmatprep.subr.bf16.mxu0 0
    %228 = vmatpush1.bf16.msra.mxu0 0
    %229 = vmatprep.mubr.bf16.mxu0 0
    %230 = vmatmul.mubr.bf16.gmra.mrb[0].mxu0 %v143
    %v231 = vpop.f32.mrb[0].mxu0
    %v232 = vadd.f32 %v148, %v231
    %v233 = vpop.f32.mrb[0].mxu0
    %v234 = vpop.f32.mrb[0].mxu0
    %v235 = vpop.f32.mrb[0].mxu0
    %236 = vdwg.mxu0
    %v237 = vmax.f32 %v232, 0.0
    %v238 = vld [vmem:[%s3] sm:$0x1]
    %v239 = vunpack.c.l.bf16 %v238
    %v240 = vld [vmem:[%s4 + $0x2] sm:$0x1]
    %v241 = vlaneseq
    %v242 = vshrl.u32 %v241, 7
    %v243 = vsub.s32 0, %v242
    %v244 = vrot.slane %v239, %v243
    %v245 = vmul.f32 %v237, %v244
    %246 = vadd.xlane.f32.xlu0 %v245
    %v247 = vpop.xlane.xlu0 %246
    %v248 = vlaneseq
    %v249 = vshrl.u32 %v248, 7
    %v250 = vsub.s32 0, %v249
    %v251 = vrot.slane %v240, %v250
    %v252 = vadd.f32 %v247, %v251
    %vm253 = vcmask 7168
    %254 = vst.msk [vmem:[%s5] sm:$0xff] %vm253, %v252
    // Predicated region
    $region34: #{tpu_custom_call.1} parent=1 // pred_check
      _
    $region35: #{tpu_custom_call.1} parent=1 // pred_check_branch
      %256 = sbr.rel (0) target = $region37
    $region36: #{tpu_custom_call.1} parent=1 // pred_region
      _
    $region37: #{tpu_custom_call.1} parent=1 // pred_fallthru
      _
    // Predicated region
    $region38: #{tpu_custom_call.1} parent=1 // pred_check
      _
    $region39: #{tpu_custom_call.1} parent=1 // pred_check_branch
      %258 = sbr.rel (0) target = $region41
    $region40: #{tpu_custom_call.1} parent=1 // pred_region
      _
    $region41: #{tpu_custom_call.1} parent=1 // pred_fallthru
      _
    %259 = vsyncpa [#allocation3], 1
    %260 = vsyncpa [#allocation5], 1

</llo_original>
